<compile_context>
chip_gen: v5e
topology: v5e:2x2
jax: 0.10.0
libtpu: 0.0.40
codegen_flags: <defaults>
</compile_context>

<pallas_src>
import numpy as np
import jax
import jax.numpy as jnp
from jax import lax
from jax.experimental import pallas as pl
from jax.experimental.pallas import tpu as pltpu


def tau_decompose(taus):
    mlos, mhis, l_begin, l_end = [], [], [], []
    for l, t in enumerate(taus):
        l_begin.append(0 if not mhis else mhis[-1])
        for _ in range(t):
            mlos.append(0 if not mhis else mhis[-1])
            mhis.append(mlos[-1] + 2 * l + 1)
        l_end.append(0 if not mhis else mhis[-1])
    return mlos, mhis, l_begin, l_end


def _make_kernel(k0):
    """k0 = taus[0]; the gate input is the k0 l=0 channel rows (re/im pairs)."""

    def kernel(x_ref, wr_ref, wi_ref, b_ref, e_ref, p_ref, o_ref):
        x = x_ref[0]                                  # [CH, tM] feature-major, lane-dense
        tm = x.shape[-1]
        x0 = x[:k0, :].astype(jnp.float32)            # [k0, tM] l=0 rows; lanes = (t,f,re/im)

        # --- pair bookkeeping on the lane axis (pairs are (2f, 2f+1)) -------
        ids = lax.broadcasted_iota(jnp.int32, (1, tm), 1)
        even = (ids & 1) == 0                         # True on real lanes
        partner = ids ^ 1                             # lane index of the pair partner
        rp = pltpu.roll(x0, 1, axis=1)                # shift by one lane (HW convention A)
        rm = pltpu.roll(x0, tm - 1, axis=1)           # shift the other way  (convention B)
        # pick, per lane, whichever roll actually delivers the partner lane
        # (rolling the iota alongside makes this robust to either convention).
        use_p = pltpu.roll(ids, 1, axis=1) == partner
        x0_partner = jnp.where(use_p, rp, rm)         # x0[c, m ^ 1]

        # real / imag value of each (t, f) pair, replicated on both lanes
        re_rows = jnp.where(even, x0, x0_partner)     # [k0, tM]
        im_rows = jnp.where(even, x0_partner, x0)     # [k0, tM]

        # --- gates: logit[g, m] = sum_c Wr[g,c]*Re + Wi[g,c]*Im + b[g] ------
        logits = (jnp.dot(wr_ref[...], re_rows, preferred_element_type=jnp.float32)
                  + jnp.dot(wi_ref[...], im_rows, preferred_element_type=jnp.float32)
                  + b_ref[...])                       # [G, tM], constant over each pair
        gates = jax.nn.sigmoid(logits)

        # --- per-channel multiplier: gated rows -> gate, others -> exactly 1
        mult = (jnp.dot(e_ref[...], gates, preferred_element_type=jnp.float32)
                + p_ref[...])                         # [CH, tM]
        o_ref[0] = (x * mult).astype(o_ref.dtype)

    return kernel


def _pick_lane_tile(M, ch, itemsize, target_bytes=2 << 20):
    """Largest lane tile that is a multiple of 128, divides M and keeps the
    block under ~target_bytes.  Falls back to the full axis (always legal)."""
    if M % 128 == 0:
        max_mult = max(1, min(M // 128, target_bytes // (ch * 128 * itemsize)))
        for t in range(max_mult, 0, -1):
            if M % (t * 128) == 0:
                return t * 128
    # M has no multiple-of-128 divisor: use the whole axis (fine for typical
    # sizes; a huge, awkwardly-factored M would need padded tiles).
    return M


def spherical_harmonics_domain_activation(x, wr, wi, bias, emat, passthru, taus):
    """x: [B, CH, T, F, 2] -> same shape, gated per the module semantics."""
    B, CH, T, F, R = x.shape
    assert R == 2
    _, _, _, l_end = tau_decompose(taus)
    assert CH == l_end[-1]

    G = emat.shape[1]
    if G == 0:                       # no gated l: the module is an exact passthrough
        return x
    assert taus[0] > 0

    M = T * F * 2
    xr = x.reshape(B, CH, M)         # free reshape (merges contiguous minor dims)
    itemsize = jnp.dtype(x.dtype).itemsize
    tM = _pick_lane_tile(M, CH, itemsize)
    # v7x megacore: prefer >= 2 grid steps so both TensorCores get work.
    if B * (M // tM) < 2 and tM % 256 == 0:
        tM //= 2
    grid = (B, M // tM)

    block_bytes = CH * tM * itemsize
    vmem_limit = int(min(64 * 1024 * 1024, max(32 * 1024 * 1024, 6 * block_bytes)))

    out = pl.pallas_call(
        _make_kernel(taus[0]),
        out_shape=jax.ShapeDtypeStruct((B, CH, M), x.dtype),
        grid_spec=pltpu.PrefetchScalarGridSpec(
            num_scalar_prefetch=0,
            grid=grid,
            in_specs=[
                pl.BlockSpec((1, CH, tM), lambda b, m: (b, 0, m)),   # x slab
                pl.BlockSpec(wr.shape, lambda b, m: (0, 0)),         # [G, k0] real weights
                pl.BlockSpec(wi.shape, lambda b, m: (0, 0)),         # [G, k0] imag weights
                pl.BlockSpec(bias.shape, lambda b, m: (0, 0)),       # [G, 1]
                pl.BlockSpec(emat.shape, lambda b, m: (0, 0)),       # [CH, G] group expansion
                pl.BlockSpec(passthru.shape, lambda b, m: (0, 0)),   # [CH, 1] ungated mask
            ],
            out_specs=pl.BlockSpec((1, CH, tM), lambda b, m: (b, 0, m)),
        ),
        compiler_params=pltpu.CompilerParams(
            dimension_semantics=("parallel", "parallel"),
            vmem_limit_bytes=vmem_limit),
    )(xr, wr, wi, bias, emat, passthru)

    return out.reshape(B, CH, T, F, 2)


def build_params(taus, l_use_list, key):
    """Deterministic init (nn.Linear uniform bounds) + packed kernel params."""
    _, _, l_begin, l_end = tau_decompose(taus)
    CH = l_end[-1]
    l_use = [0] * len(taus)
    for l in l_use_list:
        l_use[l] = 1
    assert l_use[0] == 0
    used_ls = [l for l in range(1, len(taus)) if l_use[l] and taus[l] > 0]

    k0 = taus[0]
    K = 2 * k0
    bound = 1.0 / np.sqrt(max(K, 1))
    ws, bs = [], []
    keys = jax.random.split(key, 2 * max(len(used_ls), 1))
    for i, l in enumerate(used_ls):
        w = jax.random.uniform(keys[2 * i], (taus[l], K),
                               minval=-bound, maxval=bound, dtype=jnp.float32)
        b = jax.random.uniform(keys[2 * i + 1], (taus[l],),
                               minval=-bound, maxval=bound, dtype=jnp.float32)
        ws.append(w)
        bs.append(b)

    G = sum(taus[l] for l in used_ls)
    wr = np.zeros((G, k0), np.float32)
    wi = np.zeros((G, k0), np.float32)
    bias = np.zeros((G, 1), np.float32)
    emat = np.zeros((CH, G), np.float32)
    g = 0
    for i, l in enumerate(used_ls):
        w_np = np.asarray(ws[i])
        b_np = np.asarray(bs[i])
        for j in range(taus[l]):
            wr[g] = w_np[j, 0::2]          # weights on real parts (k = 2c)
            wi[g] = w_np[j, 1::2]          # weights on imag parts (k = 2c+1)
            bias[g, 0] = b_np[j]
            base = l_begin[l] + j * (2 * l + 1)
            emat[base:base + 2 * l + 1, g] = 1.0
            g += 1

    # 1.0 on channels that are NOT gated (exact passthrough), 0.0 on gated ones.
    passthru = (emat.sum(axis=1, keepdims=True) == 0.0).astype(np.float32)  # [CH, 1]

    return (jnp.asarray(wr), jnp.asarray(wi), jnp.asarray(bias),
            jnp.asarray(emat), jnp.asarray(passthru), ws, bs, used_ls)


def reference(x, taus, l_use_list, ws, bs, used_ls):
    """Pure-JAX mirror of the PyTorch forward, for verification."""
    _, _, l_begin, l_end = tau_decompose(taus)
    l_use = [0] * len(taus)
    for l in l_use_list:
        l_use[l] = 1
    B, CH, T, F, _ = x.shape
    xp = jnp.transpose(x, (0, 2, 3, 1, 4)).reshape(B * T * F, CH, 2)
    x0 = xp[:, l_begin[0]:l_end[0]].reshape(B * T * F, taus[0] * 2)
    w_by_l = {l: (ws[i], bs[i]) for i, l in enumerate(used_ls)}
    ret = []
    for l, tau in enumerate(taus):
        if l == 0:
            ret.append(xp[:, l_begin[0]:l_end[0]])
        elif taus[l]:
            xl = xp[:, l_begin[l]:l_end[l]]
            if l_use[l]:
                xl = xl.reshape(B * T * F, taus[l], (2 * l + 1) * 2)
                w, b = w_by_l[l]
                activ = (x0 @ w.T + b)[:, :, None]
                xl = xl * jax.nn.sigmoid(activ)
                xl = xl.reshape(B * T * F, taus[l] * (2 * l + 1), 2)
            ret.append(xl)
    out = jnp.concatenate(ret, axis=1).reshape(B, T, F, CH, 2)
    return jnp.transpose(out, (0, 3, 1, 2, 4))


if __name__ == "__main__":
    taus = [2, 2, 1]          # CH = 2*1 + 2*3 + 1*5 = 13
    l_use_list = [1, 2]
    B, T, F = 2, 8, 8
    _, _, _, l_end = tau_decompose(taus)
    CH = l_end[-1]

    key = jax.random.PRNGKey(0)
    kx, kp = jax.random.split(key)
    x = jax.random.normal(kx, (B, CH, T, F, 2), dtype=jnp.float32)

    wr, wi, bias, emat, passthru, ws, bs, used_ls = build_params(taus, l_use_list, kp)

    fwd = jax.jit(lambda x_, wr_, wi_, b_, e_, p_:
                  spherical_harmonics_domain_activation(x_, wr_, wi_, b_, e_, p_, taus))
    out = jax.block_until_ready(fwd(x, wr, wi, bias, emat, passthru))

    ref = reference(x, taus, l_use_list, ws, bs, used_ls)
    assert out.shape == x.shape
    assert jnp.allclose(out, ref, atol=1e-5, rtol=1e-5), "mismatch vs reference"
    print("KERNEL_OK")
</pallas_src>

<mosaic_0001>
module attributes {stable_mosaic.version = 11 : i64} {
  func.func @kernel(%arg0: i32, %arg1: i32, %arg2: memref<1x13x128xf32, #tpu.memory_space<vmem>>, %arg3: memref<3x2xf32, #tpu.memory_space<vmem>>, %arg4: memref<3x2xf32, #tpu.memory_space<vmem>>, %arg5: memref<3x1xf32, #tpu.memory_space<vmem>>, %arg6: memref<13x3xf32, #tpu.memory_space<vmem>>, %arg7: memref<13x1xf32, #tpu.memory_space<vmem>>, %arg8: memref<1x13x128xf32, #tpu.memory_space<vmem>>) attributes {dimension_semantics = [#tpu.dimension_semantics<parallel>, #tpu.dimension_semantics<parallel>], iteration_bounds = array<i64: 2, 1>, scalar_prefetch = 0 : i64, scratch_operands = 0 : i64, tpu.core_type = #tpu.core_type<tc>, window_params = [{transform_indices = @transform_0, window_bounds = array<i64: 1, 13, 128>}, {pipeline_mode = #tpu.pipeline_mode<synchronous>, transform_indices = @transform_1, window_bounds = array<i64: 3, 2>}, {pipeline_mode = #tpu.pipeline_mode<synchronous>, transform_indices = @transform_2, window_bounds = array<i64: 3, 2>}, {pipeline_mode = #tpu.pipeline_mode<synchronous>, transform_indices = @transform_3, window_bounds = array<i64: 3, 1>}, {pipeline_mode = #tpu.pipeline_mode<synchronous>, transform_indices = @transform_4, window_bounds = array<i64: 13, 3>}, {pipeline_mode = #tpu.pipeline_mode<synchronous>, transform_indices = @transform_5, window_bounds = array<i64: 13, 1>}, {transform_indices = @transform_6, window_bounds = array<i64: 1, 13, 128>}]} {
    %c0 = arith.constant 0 : index
    %c0_0 = arith.constant 0 : index
    %c0_1 = arith.constant 0 : index
    %0 = vector.load %arg2[%c0, %c0_0, %c0_1] : memref<1x13x128xf32, #tpu.memory_space<vmem>>, vector<1x13x128xf32>
    %1 = vector.shape_cast %0 : vector<1x13x128xf32> to vector<13x128xf32>
    %2 = vector.extract_strided_slice %1 {offsets = [0, 0], sizes = [2, 128], strides = [1, 1]} : vector<13x128xf32> to vector<2x128xf32>
    %3 = tpu.iota {dimensions = array<i32: 1>} : vector<1x128xi32>
    %c1_i32 = arith.constant 1 : i32
    %4 = vector.broadcast %c1_i32 : i32 to vector<1x128xi32>
    %5 = arith.andi %3, %4 : vector<1x128xi32>
    %c0_i32 = arith.constant 0 : i32
    %6 = vector.broadcast %c0_i32 : i32 to vector<1x128xi32>
    %7 = arith.cmpi eq, %5, %6 : vector<1x128xi32>
    %c1_i32_2 = arith.constant 1 : i32
    %8 = vector.broadcast %c1_i32_2 : i32 to vector<1x128xi32>
    %9 = arith.xori %3, %8 : vector<1x128xi32>
    %c1_i32_3 = arith.constant 1 : i32
    %10 = tpu.dynamic_rotate %2 by %c1_i32_3 dim 1 : vector<2x128xf32>, i32 -> vector<2x128xf32>
    %c127_i32 = arith.constant 127 : i32
    %11 = tpu.dynamic_rotate %2 by %c127_i32 dim 1 : vector<2x128xf32>, i32 -> vector<2x128xf32>
    %c1_i32_4 = arith.constant 1 : i32
    %12 = tpu.dynamic_rotate %3 by %c1_i32_4 dim 1 : vector<1x128xi32>, i32 -> vector<1x128xi32>
    %13 = arith.cmpi eq, %12, %9 : vector<1x128xi32>
    %14 = vector.shape_cast %13 : vector<1x128xi1> to vector<1x128xi1>
    %15 = vector.broadcast %14 : vector<1x128xi1> to vector<2x128xi1>
    %16 = arith.select %15, %10, %11 : vector<2x128xi1>, vector<2x128xf32>
    %17 = vector.shape_cast %7 : vector<1x128xi1> to vector<1x128xi1>
    %18 = vector.broadcast %17 : vector<1x128xi1> to vector<2x128xi1>
    %19 = arith.select %18, %2, %16 : vector<2x128xi1>, vector<2x128xf32>
    %20 = vector.shape_cast %7 : vector<1x128xi1> to vector<1x128xi1>
    %21 = vector.broadcast %20 : vector<1x128xi1> to vector<2x128xi1>
    %22 = arith.select %21, %16, %2 : vector<2x128xi1>, vector<2x128xf32>
    %c0_5 = arith.constant 0 : index
    %c0_6 = arith.constant 0 : index
    %23 = vector.load %arg3[%c0_5, %c0_6] : memref<3x2xf32, #tpu.memory_space<vmem>>, vector<3x2xf32>
    %cst = arith.constant dense<0.000000e+00> : vector<3x128xf32>
    %24 = tpu.matmul %23, %19, %cst {dimension_numbers = #tpu.dot_dimension_numbers<[1], [0], [0], [1], [0, 0, 1, 1], [], []>} : vector<3x2xf32>, vector<2x128xf32>, vector<3x128xf32> -> vector<3x128xf32>
    %c0_7 = arith.constant 0 : index
    %c0_8 = arith.constant 0 : index
    %25 = vector.load %arg4[%c0_7, %c0_8] : memref<3x2xf32, #tpu.memory_space<vmem>>, vector<3x2xf32>
    %cst_9 = arith.constant dense<0.000000e+00> : vector<3x128xf32>
    %26 = tpu.matmul %25, %22, %cst_9 {dimension_numbers = #tpu.dot_dimension_numbers<[1], [0], [0], [1], [0, 0, 1, 1], [], []>} : vector<3x2xf32>, vector<2x128xf32>, vector<3x128xf32> -> vector<3x128xf32>
    %27 = arith.addf %24, %26 : vector<3x128xf32>
    %c0_10 = arith.constant 0 : index
    %c0_11 = arith.constant 0 : index
    %28 = vector.load %arg5[%c0_10, %c0_11] : memref<3x1xf32, #tpu.memory_space<vmem>>, vector<3x1xf32>
    %29 = vector.broadcast %28 : vector<3x1xf32> to vector<3x128xf32>
    %30 = arith.addf %27, %29 : vector<3x128xf32>
    %31 = arith.negf %30 : vector<3x128xf32>
    %32 = math.exp %31 : vector<3x128xf32>
    %cst_12 = arith.constant 1.000000e+00 : f32
    %33 = vector.broadcast %cst_12 : f32 to vector<3x128xf32>
    %34 = arith.addf %33, %32 : vector<3x128xf32>
    %35 = arith.divf %33, %34 : vector<3x128xf32>
    %c0_13 = arith.constant 0 : index
    %c0_14 = arith.constant 0 : index
    %36 = vector.load %arg6[%c0_13, %c0_14] : memref<13x3xf32, #tpu.memory_space<vmem>>, vector<13x3xf32>
    %cst_15 = arith.constant dense<0.000000e+00> : vector<13x128xf32>
    %37 = tpu.matmul %36, %35, %cst_15 {dimension_numbers = #tpu.dot_dimension_numbers<[1], [0], [0], [1], [0, 0, 1, 1], [], []>} : vector<13x3xf32>, vector<3x128xf32>, vector<13x128xf32> -> vector<13x128xf32>
    %c0_16 = arith.constant 0 : index
    %c0_17 = arith.constant 0 : index
    %38 = vector.load %arg7[%c0_16, %c0_17] : memref<13x1xf32, #tpu.memory_space<vmem>>, vector<13x1xf32>
    %39 = vector.broadcast %38 : vector<13x1xf32> to vector<13x128xf32>
    %40 = arith.addf %37, %39 : vector<13x128xf32>
    %41 = arith.mulf %1, %40 : vector<13x128xf32>
    %c0_18 = arith.constant 0 : index
    %c0_19 = arith.constant 0 : index
    %c0_20 = arith.constant 0 : index
    %42 = vector.load %arg8[%c0_18, %c0_19, %c0_20] : memref<1x13x128xf32, #tpu.memory_space<vmem>>, vector<1x13x128xf32>
    %43 = vector.shape_cast %42 : vector<1x13x128xf32> to vector<13x128xf32>
    %44 = vector.shape_cast %41 : vector<13x128xf32> to vector<1x13x128xf32>
    tpu.vector_store %arg8[%c0_18, %c0_19, %c0_20], %44 {strides = array<i32>} : memref<1x13x128xf32, #tpu.memory_space<vmem>>, vector<1x13x128xf32>,
    return
  }
  func.func @transform_0(%arg0: i32, %arg1: i32) -> (i32, i32, i32) {
    %c0_i32 = arith.constant 0 : i32
    %c0_i32_0 = arith.constant 0 : i32
    return %arg0, %c0_i32, %arg1 : i32, i32, i32
  }
  func.func @transform_1(%arg0: i32, %arg1: i32) -> (i32, i32) {
    %c0_i32 = arith.constant 0 : i32
    %c0_i32_0 = arith.constant 0 : i32
    %c0_i32_1 = arith.constant 0 : i32
    return %c0_i32, %c0_i32_0 : i32, i32
  }
  func.func @transform_2(%arg0: i32, %arg1: i32) -> (i32, i32) {
    %c0_i32 = arith.constant 0 : i32
    %c0_i32_0 = arith.constant 0 : i32
    %c0_i32_1 = arith.constant 0 : i32
    return %c0_i32, %c0_i32_0 : i32, i32
  }
  func.func @transform_3(%arg0: i32, %arg1: i32) -> (i32, i32) {
    %c0_i32 = arith.constant 0 : i32
    %c0_i32_0 = arith.constant 0 : i32
    %c0_i32_1 = arith.constant 0 : i32
    return %c0_i32, %c0_i32_0 : i32, i32
  }
  func.func @transform_4(%arg0: i32, %arg1: i32) -> (i32, i32) {
    %c0_i32 = arith.constant 0 : i32
    %c0_i32_0 = arith.constant 0 : i32
    %c0_i32_1 = arith.constant 0 : i32
    return %c0_i32, %c0_i32_0 : i32, i32
  }
  func.func @transform_5(%arg0: i32, %arg1: i32) -> (i32, i32) {
    %c0_i32 = arith.constant 0 : i32
    %c0_i32_0 = arith.constant 0 : i32
    %c0_i32_1 = arith.constant 0 : i32
    return %c0_i32, %c0_i32_0 : i32, i32
  }
  func.func @transform_6(%arg0: i32, %arg1: i32) -> (i32, i32, i32) {
    %c0_i32 = arith.constant 0 : i32
    %c0_i32_0 = arith.constant 0 : i32
    return %arg0, %c0_i32, %arg1 : i32, i32, i32
  }
}

</mosaic_0001>

<llo_original>
// kernel: _lambda_.1
$region0: #{_lambda_.1}
  #allocation0 [shape = 'u32[]', space=smem, size = 0x4, offset = 0x4, fixed_abs, tag = 'smem constant byte address 0x4 - core index']
  #allocation1 [shape = 'u32[72,128]{1,0:T(1,128)}', space=vmem, size = 0x9000, scoped, tag = 'internal scratch']
  %s0 = inlined_call_operand.vmem [shape: f32[2,13,128], index: 0, kind: input, shape index: {}]
  %s1 = inlined_call_operand.vmem [shape: f32[3,2], index: 1, kind: input, shape index: {}]
  %s2 = inlined_call_operand.vmem [shape: f32[3,2], index: 2, kind: input, shape index: {}]
  %s3 = inlined_call_operand.vmem [shape: f32[3,1], index: 3, kind: input, shape index: {}]
  %s4 = inlined_call_operand.vmem [shape: f32[13,3], index: 4, kind: input, shape index: {}]
  %s5 = inlined_call_operand.vmem [shape: f32[13,1], index: 5, kind: input, shape index: {}]
  %s6 = inlined_call_operand.vmem [shape: f32[2,13,128], index: 6, kind: output, shape index: {}]
  %s7 = sld [smem:[#allocation0]]
  $region57: #{_lambda_.1} parent=0
    _
  %s9 = ssub.s32 1, %s7
  %s10 = scalar_select 0, %s9, %s7
  loop: start=0, step=1, limit=4
  $region2: #{_lambda_.1} parent=0 // loop_pre_header
    _
  $region3: #{_lambda_.1} parent=0 // loop_header
    %s12 = sphi 0, %s16
    %p13 = scmp.ge.s32.totalorder %s12, 4
    %s19 = sphi 0, %s31
    %s20 = sphi 0, %s27
    %s21 = sphi 0, %s19
    %s22 = sphi 0, %s20
    %s23 = sphi 0, %s21
    %s24 = sphi 0, %s22
    %s36 = sphi 0, %s38
    %s39 = sphi 0, %s36
    %s40 = sphi 0, %s39
    %s56 = sphi 0, %s40
    %s60 = sphi 0, %s60
    %s62 = sphi 0, %s60
    %s63 = sphi 0, %s62
    %s77 = sphi 0, %s63
    %s81 = sphi 0, %s81
    %s83 = sphi 0, %s81
    %s84 = sphi 0, %s83
    %s98 = sphi 0, %s84
    %s102 = sphi 0, %s102
    %s104 = sphi 0, %s102
    %s105 = sphi 0, %s104
    %s119 = sphi 0, %s105
    %s123 = sphi 0, %s123
    %s125 = sphi 0, %s123
    %s126 = sphi 0, %s125
    %s140 = sphi 0, %s126
    %s144 = sphi 0, %s144
    %s146 = sphi 0, %s144
    %s147 = sphi 0, %s146
    %s161 = sphi 0, %s147
    %s169 = sphi 0, %s171
    %s172 = sphi 0, %s169
    %s173 = sphi 0, %s172
    %s189 = sphi 0, %s173
  $region4: #{_lambda_.1} parent=0 // loop_header_branch
    %15 = sbr.rel (%p13) target = $region8
  $region5: #{_lambda_.1} parent=0 // loop_body
    %s17 = ssub.s32 %s12, 1
    %s18 = ssub.s32 %s12, 2
    %s25 = sadd.s32 1, %s20
    %p26 = scmp.ge.s32.totalorder %s25, 1
    %s27 = scalar_select %p26, 0, %s25
    %s28 = sadd.s32 1, %s19
    %s29 = scalar_select %p26, %s28, %s19
    %p30 = scmp.ge.s32.totalorder %s29, 2
    %s31 = scalar_select %p30, 0, %s29
    %s32 = ssub.s32 %s19, %s31
    %s33 = ssub.s32 %s20, %s27
    %s34 = sor.u32 %s32, %s33
    %p35 = scmp.eq.s32.totalorder %s34, 0
    %s37 = sadd.s32 %s36, 1
    %s38 = scalar_select %p35, %s36, %s37
    %p41 = pneg %p35
    %p42 = scmp.eq.s32.totalorder %s12, 1
    %p43 = por %p41, %p42
    %p44 = scmp.ne.s32.totalorder %s36, %s39
    %p45 = scmp.eq.s32.totalorder %s12, 0
    %p46 = por %p44, %p45
    %p47 = scmp.ne.s32.totalorder %s36, %s39
    %p48 = scmp.eq.s32.totalorder %s17, 1
    %p49 = por %p47, %p48
    %p50 = scmp.ne.s32.totalorder %s39, %s40
    %p51 = scmp.eq.s32.totalorder %s17, 0
    %p52 = por %p50, %p51
    %p53 = scmp.ne.s32.totalorder %s39, %s40
    %p54 = scmp.eq.s32.totalorder %s18, 1
    %p55 = por %p53, %p54
    %p57 = scmp.ne.s32.totalorder %s40, %s56
    %p58 = scmp.eq.s32.totalorder %s18, 0
    %p59 = por %p57, %p58
    %s61 = sadd.s32 %s60, 1
    %p64 = scmp.eq.s32.totalorder %s12, 1
    %p65 = scmp.ne.s32.totalorder %s60, %s62
    %p66 = scmp.eq.s32.totalorder %s12, 0
    %p67 = por %p65, %p66
    %p68 = scmp.ne.s32.totalorder %s60, %s62
    %p69 = scmp.eq.s32.totalorder %s17, 1
    %p70 = por %p68, %p69
    %p71 = scmp.ne.s32.totalorder %s62, %s63
    %p72 = scmp.eq.s32.totalorder %s17, 0
    %p73 = por %p71, %p72
    %p74 = scmp.ne.s32.totalorder %s62, %s63
    %p75 = scmp.eq.s32.totalorder %s18, 1
    %p76 = por %p74, %p75
    %p78 = scmp.ne.s32.totalorder %s63, %s77
    %p79 = scmp.eq.s32.totalorder %s18, 0
    %p80 = por %p78, %p79
    %s82 = sadd.s32 %s81, 1
    %p85 = scmp.eq.s32.totalorder %s12, 1
    %p86 = scmp.ne.s32.totalorder %s81, %s83
    %p87 = scmp.eq.s32.totalorder %s12, 0
    %p88 = por %p86, %p87
    %p89 = scmp.ne.s32.totalorder %s81, %s83
    %p90 = scmp.eq.s32.totalorder %s17, 1
    %p91 = por %p89, %p90
    %p92 = scmp.ne.s32.totalorder %s83, %s84
    %p93 = scmp.eq.s32.totalorder %s17, 0
    %p94 = por %p92, %p93
    %p95 = scmp.ne.s32.totalorder %s83, %s84
    %p96 = scmp.eq.s32.totalorder %s18, 1
    %p97 = por %p95, %p96
    %p99 = scmp.ne.s32.totalorder %s84, %s98
    %p100 = scmp.eq.s32.totalorder %s18, 0
    %p101 = por %p99, %p100
    %s103 = sadd.s32 %s102, 1
    %p106 = scmp.eq.s32.totalorder %s12, 1
    %p107 = scmp.ne.s32.totalorder %s102, %s104
    %p108 = scmp.eq.s32.totalorder %s12, 0
    %p109 = por %p107, %p108
    %p110 = scmp.ne.s32.totalorder %s102, %s104
    %p111 = scmp.eq.s32.totalorder %s17, 1
    %p112 = por %p110, %p111
    %p113 = scmp.ne.s32.totalorder %s104, %s105
    %p114 = scmp.eq.s32.totalorder %s17, 0
    %p115 = por %p113, %p114
    %p116 = scmp.ne.s32.totalorder %s104, %s105
    %p117 = scmp.eq.s32.totalorder %s18, 1
    %p118 = por %p116, %p117
    %p120 = scmp.ne.s32.totalorder %s105, %s119
    %p121 = scmp.eq.s32.totalorder %s18, 0
    %p122 = por %p120, %p121
    %s124 = sadd.s32 %s123, 1
    %p127 = scmp.eq.s32.totalorder %s12, 1
    %p128 = scmp.ne.s32.totalorder %s123, %s125
    %p129 = scmp.eq.s32.totalorder %s12, 0
    %p130 = por %p128, %p129
    %p131 = scmp.ne.s32.totalorder %s123, %s125
    %p132 = scmp.eq.s32.totalorder %s17, 1
    %p133 = por %p131, %p132
    %p134 = scmp.ne.s32.totalorder %s125, %s126
    %p135 = scmp.eq.s32.totalorder %s17, 0
    %p136 = por %p134, %p135
    %p137 = scmp.ne.s32.totalorder %s125, %s126
    %p138 = scmp.eq.s32.totalorder %s18, 1
    %p139 = por %p137, %p138
    %p141 = scmp.ne.s32.totalorder %s126, %s140
    %p142 = scmp.eq.s32.totalorder %s18, 0
    %p143 = por %p141, %p142
    %s145 = sadd.s32 %s144, 1
    %p148 = scmp.eq.s32.totalorder %s12, 1
    %p149 = scmp.ne.s32.totalorder %s144, %s146
    %p150 = scmp.eq.s32.totalorder %s12, 0
    %p151 = por %p149, %p150
    %p152 = scmp.ne.s32.totalorder %s144, %s146
    %p153 = scmp.eq.s32.totalorder %s17, 1
    %p154 = por %p152, %p153
    %p155 = scmp.ne.s32.totalorder %s146, %s147
    %p156 = scmp.eq.s32.totalorder %s17, 0
    %p157 = por %p155, %p156
    %p158 = scmp.ne.s32.totalorder %s146, %s147
    %p159 = scmp.eq.s32.totalorder %s18, 1
    %p160 = por %p158, %p159
    %p162 = scmp.ne.s32.totalorder %s147, %s161
    %p163 = scmp.eq.s32.totalorder %s18, 0
    %p164 = por %p162, %p163
    %s165 = ssub.s32 %s19, %s31
    %s166 = ssub.s32 %s20, %s27
    %s167 = sor.u32 %s165, %s166
    %p168 = scmp.eq.s32.totalorder %s167, 0
    %s170 = sadd.s32 %s169, 1
    %s171 = scalar_select %p168, %s169, %s170
    %p174 = pneg %p168
    %p175 = scmp.eq.s32.totalorder %s12, 1
    %p176 = por %p174, %p175
    %p177 = scmp.ne.s32.totalorder %s169, %s172
    %p178 = scmp.eq.s32.totalorder %s12, 0
    %p179 = por %p177, %p178
    %p180 = scmp.ne.s32.totalorder %s169, %s172
    %p181 = scmp.eq.s32.totalorder %s17, 1
    %p182 = por %p180, %p181
    %p183 = scmp.ne.s32.totalorder %s172, %s173
    %p184 = scmp.eq.s32.totalorder %s17, 0
    %p185 = por %p183, %p184
    %p186 = scmp.ne.s32.totalorder %s172, %s173
    %p187 = scmp.eq.s32.totalorder %s18, 1
    %p188 = por %p186, %p187
    %p190 = scmp.ne.s32.totalorder %s173, %s189
    %p191 = scmp.eq.s32.totalorder %s18, 0
    %p192 = por %p190, %p191
    %p193 = scmp.le.s32.totalorder 1, %s12
    %p194 = scmp.lt.s32.totalorder %s12, 3
    %p195 = pnand %p193, %p194
    %p196 = pneg %p195
    // Predicated region
    $region9: #{_lambda_.1} parent=5 // pred_check
      _
    $region10: #{_lambda_.1} parent=5 // pred_check_branch
      %198 = sbr.rel (%p195) target = $region12
    $region11: #{_lambda_.1} parent=5 // pred_region
      %s199 = ssub.s32 %s12, 1
      // Predicated region
      $region13: #{_lambda_.1} parent=11 // pred_check
        %p200 = pneg %p73
      $region14: #{_lambda_.1} parent=11 // pred_check_branch
        %202 = sbr.rel (%p200) target = $region16
      $region15: #{_lambda_.1} parent=11 // pred_region
        _
      $region16: #{_lambda_.1} parent=11 // pred_fallthru
        _
      // Predicated region
      $region17: #{_lambda_.1} parent=11 // pred_check
        %p203 = pneg %p94
      $region18: #{_lambda_.1} parent=11 // pred_check_branch
        %205 = sbr.rel (%p203) target = $region20
      $region19: #{_lambda_.1} parent=11 // pred_region
        _
      $region20: #{_lambda_.1} parent=11 // pred_fallthru
        _
      // Predicated region
      $region21: #{_lambda_.1} parent=11 // pred_check
        %p206 = pneg %p115
      $region22: #{_lambda_.1} parent=11 // pred_check_branch
        %208 = sbr.rel (%p206) target = $region24
      $region23: #{_lambda_.1} parent=11 // pred_region
        _
      $region24: #{_lambda_.1} parent=11 // pred_fallthru
        _
      // Predicated region
      $region25: #{_lambda_.1} parent=11 // pred_check
        %p209 = pneg %p136
      $region26: #{_lambda_.1} parent=11 // pred_check_branch
        %211 = sbr.rel (%p209) target = $region28
      $region27: #{_lambda_.1} parent=11 // pred_region
        _
      $region28: #{_lambda_.1} parent=11 // pred_fallthru
        _
      // Predicated region
      $region29: #{_lambda_.1} parent=11 // pred_check
        %p212 = pneg %p157
      $region30: #{_lambda_.1} parent=11 // pred_check_branch
        %214 = sbr.rel (%p212) target = $region32
      $region31: #{_lambda_.1} parent=11 // pred_region
        _
      $region32: #{_lambda_.1} parent=11 // pred_fallthru
        _
    $region12: #{_lambda_.1} parent=5 // pred_fallthru
      _
    %p215 = scmp.lt.s32.totalorder %s12, 2
    // Predicated region
    $region33: #{_lambda_.1} parent=5 // pred_check
      %p216 = pneg %p215
    $region34: #{_lambda_.1} parent=5 // pred_check_branch
      %218 = sbr.rel (%p216) target = $region36
    $region35: #{_lambda_.1} parent=5 // pred_region
      // Predicated region
      $region37: #{_lambda_.1} parent=35 // pred_check
        %p219 = pneg %p46
      $region38: #{_lambda_.1} parent=35 // pred_check_branch
        %221 = sbr.rel (%p219) target = $region40
      $region39: #{_lambda_.1} parent=35 // pred_region
        %p222 = scmp.lt.s32.totalorder %s19, 1
        %s223 = scalar_select %p222, %s19, 1
        %p224 = scmp.lt.s32.totalorder %s20, 0
        %s225 = scalar_select %p224, %s20, 0
        %s226 = smul.addr %s223, 2
        %s227 = sadd.s32 %s225, %s226
        %s228 = smul.addr %s227, 8
        %s229 = scalar_lea.vmem %s0, %s228
      $region40: #{_lambda_.1} parent=35 // pred_fallthru
        _
    $region36: #{_lambda_.1} parent=5 // pred_fallthru
      _
    %p230 = scmp.le.s32.totalorder 1, %s12
    %p231 = scmp.lt.s32.totalorder %s12, 3
    %p232 = pnand %p230, %p231
    %p233 = pneg %p232
    // Predicated region
    $region41: #{_lambda_.1} parent=5 // pred_check
      _
    $region42: #{_lambda_.1} parent=5 // pred_check_branch
      %235 = sbr.rel (%p232) target = $region44
    $region43: #{_lambda_.1} parent=5 // pred_region
      %s236 = ssub.s32 %s12, 1
      %p237 = scmp.lt.s32.totalorder %s21, 1
      %s238 = scalar_select %p237, %s21, 1
      %p239 = scmp.lt.s32.totalorder %s22, 0
      %s240 = scalar_select %p239, %s22, 0
      %s241 = smul.addr %s238, 2
      %s242 = sadd.s32 %s240, %s241
      %s243 = smul.addr %s242, 8
      %s244 = scalar_lea.vmem %s0, %s243
      %p245 = pneg %p52
      %p246 = pneg %p49
      %p247 = pneg %p73
      %p248 = pneg %p70
      %p249 = pneg %p94
      %p250 = pneg %p91
      %p251 = pneg %p115
      %p252 = pneg %p112
      %p253 = pneg %p136
      %p254 = pneg %p133
      %p255 = pneg %p157
      %p256 = pneg %p154
      %p257 = pneg %p185
      %p258 = pneg %p182
      %p259 = scmp.lt.s32.totalorder %s21, 1
      %s260 = scalar_select %p259, %s21, 1
      %p261 = scmp.lt.s32.totalorder %s22, 0
      %s262 = scalar_select %p261, %s22, 0
      %s263 = smul.addr %s260, 2
      %s264 = sadd.s32 %s262, %s263
      %s265 = smul.addr %s264, 8
      %s266 = scalar_lea.vmem %s6, %s265
      %p267 = scmp.lt.s32.totalorder %s21, 1
      %s268 = scalar_select %p267, %s21, 1
      %p269 = scmp.lt.s32.totalorder %s22, 0
      %s270 = scalar_select %p269, %s22, 0
      %s271 = smul.addr %s268, 2
      %s272 = sadd.s32 %s270, %s271
      %s273 = smul.addr %s272, 8
      %s274 = scalar_lea.vmem %s0, %s273
      %p275 = scmp.lt.s32.totalorder %s21, 1
      %s276 = scalar_select %p275, %s21, 1
      %p277 = scmp.lt.s32.totalorder %s22, 0
      %s278 = scalar_select %p277, %s22, 0
      %s279 = smul.addr %s276, 2
      %s280 = sadd.s32 %s278, %s279
      %s281 = smul.addr %s280, 8
      %s282 = scalar_lea.vmem %s6, %s281
      %v283 = vld [vmem:[%s274] sm:$0xff]
      %v284 = vld [vmem:[%s274 + $0x8] sm:$0x1f]
      %v285 = vlaneseq
      %v286 = vand.u32 %v285, 127
      %v287 = vand.u32 %v286, 1
      %vm288 = vcmp.eq.s32.totalorder %v287, 0
      %v289 = vxor.u32 %v286, 1
      %290 = vrot.lane.b32.xlu0 %v283, 1
      %v291 = vpop.permute.xlu0 %290
      %292 = vrot.lane.b32.xlu0 %v283, 127
      %v293 = vpop.permute.xlu0 %292
      %294 = vrot.lane.b32.xlu0 %v286, 1
      %v295 = vpop.permute.xlu0 %294
      %vm296 = vcmp.eq.s32.totalorder %v295, %v289
      %v297 = vsel %vm296, 1, 0
      %v298 = vperm.slane %v297, 0
      %vm299 = vcmp.eq.s32.totalorder %v298, 1
      %v300 = vsel %vm299, %v291, %v293
      %v301 = vsel %vm288, 1, 0
      %vm302 = vcmp.eq.s32.totalorder %v301, 1
      %v303 = vsel %vm302, %v283, %v300
      %v304 = vsel %vm302, %v300, %v283
      %v305 = vld [vmem:[%s1] sm:$0x7]
      %v306 = vld [vmem:[%s2] sm:$0x7]
      %vm307 = vcmask 15360
      %v309 = vsel %vm307, %v306, 0
      %vm311 = vcmask 1041408
      %v313 = vsel %vm311, %v304, 0
      %315 = vmatpush.msra.mxu0 0.0
      %316 = vmatpush.msra.mxu0 0.0
      %317 = vmatpush.msra.mxu0 0.0
      %318 = vmatpush.msra.mxu0 0.0
      %319 = vmatpush.msra.mxu0 0.0
      %320 = vmatpush.msra.mxu0 0.0
      %321 = vmatpush.msra.mxu0 0.0
      %322 = vmatpush.msra.mxu0 0.0
      %323 = vmatpush.msra.mxu0 0.0
      %324 = vmatpush.msra.mxu0 0.0
      %325 = vmatpush.msra.mxu0 0.0
      %326 = vmatpush.msra.mxu0 0.0
      %327 = vmatpush.msra.mxu0 0.0
      %328 = vmatpush.msra.mxu0 0.0
      %329 = vmatpush.msra.mxu0 0.0
      %330 = vmatpush.msra.mxu0 %v313
      %331 = vmatmul.f32.gmra.mxu0 %v309
      %v332 = vpop.f32.mrf.mxu0
      %v333 = vadd.f32 0.0, %v332
      %334 = vdwg.mxu0
      %v336 = vsel %vm307, %v305, 0
      %v339 = vsel %vm311, %v303, 0
      %341 = vmatpush.msra.mxu0 0.0
      %342 = vmatpush.msra.mxu0 0.0
      %343 = vmatpush.msra.mxu0 0.0
      %344 = vmatpush.msra.mxu0 0.0
      %345 = vmatpush.msra.mxu0 0.0
      %346 = vmatpush.msra.mxu0 0.0
      %347 = vmatpush.msra.mxu0 0.0
      %348 = vmatpush.msra.mxu0 0.0
      %349 = vmatpush.msra.mxu0 0.0
      %350 = vmatpush.msra.mxu0 0.0
      %351 = vmatpush.msra.mxu0 0.0
      %352 = vmatpush.msra.mxu0 0.0
      %353 = vmatpush.msra.mxu0 0.0
      %354 = vmatpush.msra.mxu0 0.0
      %355 = vmatpush.msra.mxu0 0.0
      %356 = vmatpush.msra.mxu0 %v339
      %357 = vmatmul.f32.gmra.mxu0 %v336
      %v358 = vpop.f32.mrf.mxu0
      %v359 = vadd.f32 %v333, %v358
      %360 = vdwg.mxu0
      %v361 = vld [vmem:[%s3] sm:$0x7]
      %363 = vset.pattern.permute.xlu0 0
      %364 = vperm.xlu0 %363, %v361
      %v365 = vpop.permute.xlu0 %364
      %v367 = vadd.f32 %v359, %v365
      %v368 = vxor.u32 %v367, 2147483648
      %v369 = vmul.f32 %v368, 1.442695
      %v370 = vpow.pop %v369
      %v371 = vadd.f32 %v370, 1.0
      %v372 = vrcp.pop %v371
      %v373 = vmul.f32 %v371, %v372
      %v374 = vsub.f32 1.0, %v373
      %v375 = vmul.f32 %v372, %v374
      %v376 = vadd.f32 %v372, %v375
      %vm377 = vweird.f32 %v371
      %vm378 = vweird.f32 %v372
      %vm379 = vmor %vm377, %vm378
      %v380 = vsel %vm379, %v372, %v376
      %v381 = vand.u32 2147483647, %v371
      %vm382 = vcmp.eq.f32.partialorder %v381, 8.507059e+37
      %v383 = vand.u32 %v371, 2147483648
      %v384 = vor.u32 1.1754944e-38, %v383
      %v385 = vsel %vm382, %v384, %v380
      %v386 = vmul.f32 1.0, %v385
      %v387 = vld [vmem:[%s4] sm:$0xff]
      %v388 = vld [vmem:[%s4 + $0x8] sm:$0x1f]
      %v389 = vld [vmem:[%s5] sm:$0xff]
      %v390 = vld [vmem:[%s5 + $0x8] sm:$0x1f]
      %392 = vset.pattern.permute.xlu0 0
      %393 = vperm.xlu0 %392, %v389
      %v394 = vpop.permute.xlu0 %393
      %397 = vset.pattern.permute.xlu0 0
      %398 = vperm.xlu0 %397, %v390
      %v399 = vpop.permute.xlu0 %398
      %vm401 = vcmask 23552
      %v403 = vsel %vm401, %v387, 0
      %v406 = vsel %vm401, %v388, 0
      %vm408 = vcmask 1042432
      %v410 = vsel %vm408, %v386, 0
      %412 = vmatpush.msra.mxu0 0.0
      %413 = vmatpush.msra.mxu0 0.0
      %414 = vmatpush.msra.mxu0 0.0
      %415 = vmatpush.msra.mxu0 0.0
      %416 = vmatpush.msra.mxu0 0.0
      %417 = vmatpush.msra.mxu0 0.0
      %418 = vmatpush.msra.mxu0 0.0
      %419 = vmatpush.msra.mxu0 0.0
      %420 = vmatpush.msra.mxu0 0.0
      %421 = vmatpush.msra.mxu0 0.0
      %422 = vmatpush.msra.mxu0 0.0
      %423 = vmatpush.msra.mxu0 0.0
      %424 = vmatpush.msra.mxu0 0.0
      %425 = vmatpush.msra.mxu0 0.0
      %426 = vmatpush.msra.mxu0 0.0
      %427 = vmatpush.msra.mxu0 %v410
      %428 = vmatmul.f32.gmra.mxu0 %v403
      %v429 = vpop.f32.mrf.mxu0
      %v430 = vadd.f32 %v394, %v429
      %431 = vmatmul.f32.gmra.mxu0 %v406
      %v432 = vpop.f32.mrf.mxu0
      %v433 = vadd.f32 %v399, %v432
      %434 = vdwg.mxu0
      %v435 = vmul.f32 %v283, %v430
      %v436 = vmul.f32 %v284, %v433
      %437 = vst [vmem:[%s282] sm:$0xff] %v435
      %438 = vst [vmem:[%s282 + $0x8] sm:$0x1f] %v436
      %p439 = scmp.lt.s32.totalorder %s21, 1
      %s440 = scalar_select %p439, %s21, 1
      %p441 = scmp.lt.s32.totalorder %s22, 0
      %s442 = scalar_select %p441, %s22, 0
      %s443 = smul.addr %s440, 2
      %s444 = sadd.s32 %s442, %s443
      %s445 = smul.addr %s444, 8
      %s446 = scalar_lea.vmem %s6, %s445
      // Predicated region
      $region45: #{_lambda_.1} parent=43 // pred_check
        %p447 = pneg %p182
      $region46: #{_lambda_.1} parent=43 // pred_check_branch
        %449 = sbr.rel (%p447) target = $region48
      $region47: #{_lambda_.1} parent=43 // pred_region
        _
      $region48: #{_lambda_.1} parent=43 // pred_fallthru
        _
    $region44: #{_lambda_.1} parent=5 // pred_fallthru
      _
    %p450 = scmp.le.s32.totalorder 2, %s12
    // Predicated region
    $region49: #{_lambda_.1} parent=5 // pred_check
      %p451 = pneg %p450
    $region50: #{_lambda_.1} parent=5 // pred_check_branch
      %453 = sbr.rel (%p451) target = $region52
    $region51: #{_lambda_.1} parent=5 // pred_region
      %s454 = ssub.s32 %s12, 2
      // Predicated region
      $region53: #{_lambda_.1} parent=51 // pred_check
        %p455 = pneg %p188
      $region54: #{_lambda_.1} parent=51 // pred_check_branch
        %457 = sbr.rel (%p455) target = $region56
      $region55: #{_lambda_.1} parent=51 // pred_region
        %p458 = scmp.lt.s32.totalorder %s23, 1
        %s459 = scalar_select %p458, %s23, 1
        %p460 = scmp.lt.s32.totalorder %s24, 0
        %s461 = scalar_select %p460, %s24, 0
        %s462 = smul.addr %s459, 2
        %s463 = sadd.s32 %s461, %s462
        %s464 = smul.addr %s463, 8
        %s465 = scalar_lea.vmem %s6, %s464
      $region56: #{_lambda_.1} parent=51 // pred_fallthru
        _
    $region52: #{_lambda_.1} parent=5 // pred_fallthru
      _
  $region6: #{_lambda_.1} parent=0 // loop_footer
    %s16 = sadd.s32 1, %s12
  $region7: #{_lambda_.1} parent=0 // loop_footer_branch
    %11 = sbr.rel target = $region3
  $region8: #{_lambda_.1} parent=0 // loop_exit
    _

</llo_original>
